<compile_context>
chip_gen: v7x
topology: tpu7x:2x2x1
jax: 0.10.0
libtpu: 0.0.40
codegen_flags: <defaults>
</compile_context>

<pallas_src>
import functools

import jax
import jax.numpy as jnp
from jax.experimental import pallas as pl
from jax.experimental.pallas import tpu as pltpu


def _round_up(x, m):
    return (x + m - 1) // m * m


def clr_kernel(x_ref, w_ref, b_ref, inv_temp_ref, out_ref, *, C):
    """Fused contrastive head.

    x_ref        : [Bt, K]     bf16 fused [prompt | node] activations
    w_ref        : [K, N_pad]  bf16 block-diag [W_doc | W_graph], zero-padded
    b_ref        : [1, N_pad]  f32  [b_doc | b_graph | 0...]
    inv_temp_ref : [1]         f32  exp(-temperature), SMEM scalar
    out_ref      : [Bt, N_pad] f32  [docs | graph | pred1 | 0...] lane-dense
    """
    # One MXU pass: bf16 x bf16 -> f32 accumulate; bias add in f32.
    slab = jnp.dot(x_ref[...], w_ref[...],
                   preferred_element_type=jnp.float32) + b_ref[...]
    # slab columns: [0:C) = docs_embeds, [C:2C) = graph_embeds, rest exactly 0

    docs = slab[:, :C]          # static lane slices of the slab value
    graph = slab[:, C:2 * C]

    docs_sq = jnp.sum(docs * docs, axis=-1, keepdims=True)
    graph_sq = jnp.sum(graph * graph, axis=-1, keepdims=True)
    cross = jnp.sum(docs * graph, axis=-1, keepdims=True)

    # diag(docs_nor @ graph_nor.T) * exp(-temperature)
    # (single fused rsqrt on the otherwise-idle EUP slot; temperature exp was
    #  hoisted to the wrapper, only a scalar multiply remains per row)
    pred1 = cross * jax.lax.rsqrt(docs_sq * graph_sq) * inv_temp_ref[0]

    # Single unmasked full-lane-width store of the whole row slab.
    col = jax.lax.broadcasted_iota(jnp.int32, slab.shape, 1)
    out_ref[...] = jnp.where(col == 2 * C, pred1, slab)


def pack_clr_params(w_doc, b_doc, w_graph, b_graph, log_temperature):
    """One-time parameter packing (hoist out of the per-call path).

    Under jit, close over the results so they const-fold instead of being
    re-materialized in HBM every forward.
    """
    d_doc, C = w_doc.shape
    d_graph = w_graph.shape[0]
    K = d_doc + d_graph
    N_pad = _round_up(2 * C + 1, 128)

    w = jnp.zeros((K, N_pad), jnp.float32)
    w = w.at[:d_doc, :C].set(w_doc)
    w = w.at[d_doc:, C:2 * C].set(w_graph)
    b = jnp.zeros((1, N_pad), jnp.float32)
    b = b.at[:, :C].set(b_doc.reshape(1, C))
    b = b.at[:, C:2 * C].set(b_graph.reshape(1, C))

    inv_temp = jnp.exp(-log_temperature.reshape(1)).astype(jnp.float32)
    # bf16 weights: native MXU dtype, half the weight DMA / VMEM footprint.
    return w.astype(jnp.bfloat16), b, inv_temp


def clr_forward(prompt_feats, node_feats, w_packed, b_packed, inv_temp, *,
                C, block_b=256, vmem_limit_bytes=None):
    B = prompt_feats.shape[0]
    K, N_pad = w_packed.shape
    assert prompt_feats.shape[1] + node_feats.shape[1] == K

    # Fused activations (bf16).  TODO(synk): for the scaled model pass prompt
    # and node separately and do two dense matmuls instead (see header).
    x = jnp.concatenate([prompt_feats, node_feats], axis=-1).astype(jnp.bfloat16)

    # Batch tile: full batch for the tiny demo; multiples of 16 sublanes for
    # bf16 at scale.  Pick block_b so B//bt >= 2 to feed both v7x TensorCores.
    bt = min(block_b, B)
    assert B % bt == 0 and (bt == B or bt % 16 == 0), \
        "batch must tile into bf16-aligned (multiple-of-16) blocks"
    grid = (B // bt,)

    out_padded = pl.pallas_call(
        functools.partial(clr_kernel, C=C),
        out_shape=jax.ShapeDtypeStruct((B, N_pad), jnp.float32),
        grid_spec=pltpu.PrefetchScalarGridSpec(
            num_scalar_prefetch=0,
            grid=grid,
            in_specs=[
                # activations: streamed per batch tile
                pl.BlockSpec((bt, K), lambda i: (i, 0)),
                # grid-invariant weight / bias: single-buffered (saves VMEM
                # at scale, e.g. v7x's 64 MiB)
                pl.BlockSpec((K, N_pad), lambda i: (0, 0),
                             pipeline_mode=pl.Buffered(1)),
                pl.BlockSpec((1, N_pad), lambda i: (0, 0),
                             pipeline_mode=pl.Buffered(1)),
                # exp(-temperature): scalar in SMEM, no VMEM block / DMA
                pl.BlockSpec(memory_space=pltpu.MemorySpace.SMEM),
            ],
            out_specs=pl.BlockSpec((bt, N_pad), lambda i: (i, 0)),
        ),
        compiler_params=pltpu.CompilerParams(
            dimension_semantics=("parallel",),
            # Raise on v5e (16 MiB scoped default) for scaled shapes.
            vmem_limit_bytes=vmem_limit_bytes),
    )(x, w_packed, b_packed, inv_temp)

    # Strip the lane padding outside the kernel (cheap XLA slice).
    return out_padded[:, :2 * C + 1]


def clr_reference(prompt_feats, node_feats, w_doc, b_doc, w_graph, b_graph,
                  log_temperature):
    docs = prompt_feats @ w_doc + b_doc
    graph = node_feats @ w_graph + b_graph
    docs_n = docs / jnp.linalg.norm(docs, axis=-1, keepdims=True)
    graph_n = graph / jnp.linalg.norm(graph, axis=-1, keepdims=True)
    pred1 = jnp.sum(docs_n * graph_n, axis=-1, keepdims=True) / jnp.exp(
        log_temperature[0])
    return jnp.concatenate([docs, graph, pred1], axis=-1)


if __name__ == "__main__":
    # Small shapes consistent with the forward:
    #   batch B=8, encoder feature dims D=64, out_channels C=32.
    B, D_DOC, D_GRAPH, C = 8, 64, 64, 32

    key = jax.random.PRNGKey(0)
    k1, k2, k3, k4, k5, k6 = jax.random.split(key, 6)

    prompt_feats = jax.random.normal(k1, (B, D_DOC), dtype=jnp.float32)
    node_feats = jax.random.normal(k2, (B, D_GRAPH), dtype=jnp.float32)

    # Deterministic parameter init (synthetic, not a checkpoint load).
    w_doc = jax.random.normal(k3, (D_DOC, C), dtype=jnp.float32) * 0.05
    b_doc = jax.random.normal(k4, (1, C), dtype=jnp.float32) * 0.01
    w_graph = jax.random.normal(k5, (D_GRAPH, C), dtype=jnp.float32) * 0.05
    b_graph = jax.random.normal(k6, (1, C), dtype=jnp.float32) * 0.01

    # SimLoss temperature parameter, CLIP-style init: log(1/0.07).
    log_temperature = jnp.array([jnp.log(1.0 / 0.07)], dtype=jnp.float32)

    # Pack once (hoisted out of the per-call path).
    w_packed, b_packed, inv_temp = pack_clr_params(
        w_doc, b_doc, w_graph, b_graph, log_temperature)

    out = clr_forward(prompt_feats, node_feats, w_packed, b_packed, inv_temp,
                      C=C)
    out = jax.block_until_ready(out)

    ref = clr_reference(prompt_feats, node_feats, w_doc, b_doc, w_graph,
                        b_graph, log_temperature)
    assert out.shape == (B, 2 * C + 1), out.shape
    # bf16 MXU operands vs. f32 reference -> relaxed tolerance.
    assert jnp.allclose(out, ref, atol=3e-2, rtol=3e-2), "mismatch vs reference"

    print("KERNEL_OK")
</pallas_src>

<mosaic_0001>
module attributes {stable_mosaic.version = 11 : i64} {
  func.func @clr_kernel(%arg0: i32, %arg1: memref<8x128xbf16, #tpu.memory_space<vmem>>, %arg2: memref<128x128xbf16, #tpu.memory_space<vmem>>, %arg3: memref<1x128xf32, #tpu.memory_space<vmem>>, %arg4: memref<1xf32, #tpu.memory_space<smem>>, %arg5: memref<8x128xf32, #tpu.memory_space<vmem>>) attributes {dimension_semantics = [#tpu.dimension_semantics<parallel>], iteration_bounds = array<i64: 1>, scalar_prefetch = 0 : i64, scratch_operands = 0 : i64, tpu.core_type = #tpu.core_type<tc>, window_params = [{transform_indices = @transform_0, window_bounds = array<i64: 8, 128>}, {pipeline_mode = #tpu.pipeline_mode<synchronous>, transform_indices = @transform_1, window_bounds = array<i64: 128, 128>}, {pipeline_mode = #tpu.pipeline_mode<synchronous>, transform_indices = @transform_2, window_bounds = array<i64: 1, 128>}, {transform_indices = @transform_3, window_bounds = array<i64: 1>}, {transform_indices = @transform_4, window_bounds = array<i64: 8, 128>}]} {
    %c0 = arith.constant 0 : index
    %c0_0 = arith.constant 0 : index
    %0 = vector.load %arg1[%c0, %c0_0] : memref<8x128xbf16, #tpu.memory_space<vmem>>, vector<8x128xbf16>
    %c0_1 = arith.constant 0 : index
    %c0_2 = arith.constant 0 : index
    %1 = vector.load %arg2[%c0_1, %c0_2] : memref<128x128xbf16, #tpu.memory_space<vmem>>, vector<128x128xbf16>
    %cst = arith.constant dense<0.000000e+00> : vector<8x128xf32>
    %2 = tpu.matmul %0, %1, %cst {dimension_numbers = #tpu.dot_dimension_numbers<[1], [0], [0], [1], [0, 0, 1, 1], [], []>} : vector<8x128xbf16>, vector<128x128xbf16>, vector<8x128xf32> -> vector<8x128xf32>
    %c0_3 = arith.constant 0 : index
    %c0_4 = arith.constant 0 : index
    %3 = vector.load %arg3[%c0_3, %c0_4] : memref<1x128xf32, #tpu.memory_space<vmem>>, vector<1x128xf32>
    %4 = vector.broadcast %3 : vector<1x128xf32> to vector<8x128xf32>
    %5 = arith.addf %2, %4 : vector<8x128xf32>
    %6 = vector.extract_strided_slice %5 {offsets = [0, 0], sizes = [8, 32], strides = [1, 1]} : vector<8x128xf32> to vector<8x32xf32>
    %7 = vector.extract_strided_slice %5 {offsets = [0, 32], sizes = [8, 32], strides = [1, 1]} : vector<8x128xf32> to vector<8x32xf32>
    %8 = arith.mulf %6, %6 : vector<8x32xf32>
    %cst_5 = arith.constant dense<0.000000e+00> : vector<8xf32>
    %9 = vector.multi_reduction <add>, %8, %cst_5 [1] : vector<8x32xf32> to vector<8xf32>
    %10 = vector.shape_cast %9 : vector<8xf32> to vector<8x1xf32>
    %11 = arith.mulf %7, %7 : vector<8x32xf32>
    %cst_6 = arith.constant dense<0.000000e+00> : vector<8xf32>
    %12 = vector.multi_reduction <add>, %11, %cst_6 [1] : vector<8x32xf32> to vector<8xf32>
    %13 = vector.shape_cast %12 : vector<8xf32> to vector<8x1xf32>
    %14 = arith.mulf %6, %7 : vector<8x32xf32>
    %cst_7 = arith.constant dense<0.000000e+00> : vector<8xf32>
    %15 = vector.multi_reduction <add>, %14, %cst_7 [1] : vector<8x32xf32> to vector<8xf32>
    %16 = vector.shape_cast %15 : vector<8xf32> to vector<8x1xf32>
    %17 = arith.mulf %10, %13 : vector<8x1xf32>
    %18 = math.rsqrt %17 : vector<8x1xf32>
    %19 = arith.mulf %16, %18 : vector<8x1xf32>
    %c0_8 = arith.constant 0 : index
    %20 = memref.load %arg4[%c0_8] : memref<1xf32, #tpu.memory_space<smem>>
    %21 = vector.broadcast %20 : f32 to vector<8x1xf32>
    %22 = arith.mulf %19, %21 : vector<8x1xf32>
    %23 = tpu.iota {dimensions = array<i32: 1>} : vector<8x128xi32>
    %c64_i32 = arith.constant 64 : i32
    %24 = vector.broadcast %c64_i32 : i32 to vector<8x128xi32>
    %25 = arith.cmpi eq, %23, %24 : vector<8x128xi32>
    %26 = vector.shape_cast %22 : vector<8x1xf32> to vector<8x1xf32>
    %27 = vector.broadcast %26 : vector<8x1xf32> to vector<8x128xf32>
    %28 = arith.select %25, %27, %5 : vector<8x128xi1>, vector<8x128xf32>
    %c0_9 = arith.constant 0 : index
    %c0_10 = arith.constant 0 : index
    %29 = vector.load %arg5[%c0_9, %c0_10] : memref<8x128xf32, #tpu.memory_space<vmem>>, vector<8x128xf32>
    tpu.vector_store %arg5[%c0_9, %c0_10], %28 {strides = array<i32>} : memref<8x128xf32, #tpu.memory_space<vmem>>, vector<8x128xf32>,
    return
  }
  func.func @transform_0(%arg0: i32) -> (i32, i32) {
    %c0_i32 = arith.constant 0 : i32
    %c0_i32_0 = arith.constant 0 : i32
    return %arg0, %c0_i32 : i32, i32
  }
  func.func @transform_1(%arg0: i32) -> (i32, i32) {
    %c0_i32 = arith.constant 0 : i32
    %c0_i32_0 = arith.constant 0 : i32
    %c0_i32_1 = arith.constant 0 : i32
    return %c0_i32, %c0_i32_0 : i32, i32
  }
  func.func @transform_2(%arg0: i32) -> (i32, i32) {
    %c0_i32 = arith.constant 0 : i32
    %c0_i32_0 = arith.constant 0 : i32
    %c0_i32_1 = arith.constant 0 : i32
    return %c0_i32, %c0_i32_0 : i32, i32
  }
  func.func @transform_3(%arg0: i32) -> i32 {
    %c0_i32 = arith.constant 0 : i32
    %c0_i32_0 = arith.constant 0 : i32
    return %c0_i32 : i32
  }
  func.func @transform_4(%arg0: i32) -> (i32, i32) {
    %c0_i32 = arith.constant 0 : i32
    %c0_i32_0 = arith.constant 0 : i32
    return %arg0, %c0_i32 : i32, i32
  }
}

</mosaic_0001>

<llo_original>
// kernel: tpu_custom_call.1
$region0: #{tpu_custom_call.1}
  #allocation0 [shape = 'u32[]', space=smem, size = 0x4, offset = 0x4, fixed_abs, tag = 'smem constant byte address 0x4 - core index']
  #allocation1 [shape = 'u32[144,128]{1,0:T(1,128)}', space=vmem, size = 0x12000, scoped, tag = 'internal scratch']
  #allocation2 [shape = 'f32[1]{0:T(128)S(6)}', space=smem, size = 0x200, scoped, tag = 'scoped memory for tpu_custom_call.1']
  %s0 = inlined_call_operand.hbm [shape: bf16[8,128], index: 0, kind: input, shape index: {}]
  %s1 = inlined_call_operand.hbm [shape: bf16[128,128], index: 1, kind: input, shape index: {}]
  %s2 = inlined_call_operand.vmem [shape: f32[1,128], index: 2, kind: input, shape index: {}]
  %s3 = inlined_call_operand.<no memory space> [shape: f32[1], index: 3, kind: input, shape index: {}]
  %s4 = inlined_call_operand.hbm [shape: f32[8,128], index: 4, kind: output, shape index: {}]
  %s5 = sld [smem:[#allocation0]]
  $region34: #{tpu_custom_call.1} parent=0
    _
  %s7 = ssub.s32 1, %s5
  %s8 = scalar_select 0, %s7, %s5
  %9 = sst [smem:[#allocation2]] %s3
  $region1: #{tpu_custom_call.1} parent=0
    #allocation3 [shape = 'u8[2048]{0}', space=vmem, size = 0x800, scoped, tag = 'input window, operand 0, single buffered']
    #allocation4 [shape = 's32[1]{0}', space=sflag, size = 0x4, scoped, tag = 'scoped memory for tpu_custom_call.1']
    #allocation5 [shape = 's32[1]{0}', space=sflag, size = 0x4, scoped, tag = 'scoped memory for tpu_custom_call.1']
    #allocation6 [shape = 'u8[32768]{0}', space=vmem, size = 0x8000, scoped, tag = 'input window, operand 1, single buffered']
    #allocation7 [shape = 's32[1]{0}', space=sflag, size = 0x4, scoped, tag = 'scoped memory for tpu_custom_call.1']
    #allocation8 [shape = 'u8[4096]{0}', space=vmem, size = 0x1000, scoped, tag = 'output window, operand 0, single buffered']
    %10 = vsyncpa [#allocation4], 0
    %11 = vsyncpa [#allocation7], 0
    %12 = vsyncpa [#allocation5], 0
    // Predicated region
    $region2: #{tpu_custom_call.1} parent=1 // pred_check
      _
    $region3: #{tpu_custom_call.1} parent=1 // pred_check_branch
      %14 = sbr.rel (0) target = $region5
    $region4: #{tpu_custom_call.1} parent=1 // pred_region
      %s16 = ssub.s32 64, 64
      %17 = vsyncadd [#allocation4], %s16
      %s19 = sshll.u32 [#allocation3], 4
      %s20 = int_to_ptr.vmem [resolvable:$true] %s19
      %22 = dma.hbm_to_vmem [thread:$0]  %s0, 64, %s20, [#allocation4]
    $region5: #{tpu_custom_call.1} parent=1 // pred_fallthru
      _
    // Predicated region
    $region6: #{tpu_custom_call.1} parent=1 // pred_check
      _
    $region7: #{tpu_custom_call.1} parent=1 // pred_check_branch
      %24 = sbr.rel (0) target = $region9
    $region8: #{tpu_custom_call.1} parent=1 // pred_region
      %s26 = ssub.s32 1024, 1024
      %27 = vsyncadd [#allocation7], %s26
      %s28 = sshll.u32 [#allocation6], 4
      %s29 = int_to_ptr.vmem [resolvable:$true] %s28
      %34 = dma.hbm_to_vmem [thread:$0]  %s1, 1024, %s29, [#allocation7], 64, 64, 4
    $region9: #{tpu_custom_call.1} parent=1 // pred_fallthru
      _
    // Predicated region
    $region10: #{tpu_custom_call.1} parent=1 // pred_check
      _
    $region11: #{tpu_custom_call.1} parent=1 // pred_check_branch
      %36 = sbr.rel (0) target = $region13
    $region12: #{tpu_custom_call.1} parent=1 // pred_region
      _
    $region13: #{tpu_custom_call.1} parent=1 // pred_fallthru
      _
    // Predicated region
    $region14: #{tpu_custom_call.1} parent=1 // pred_check
      _
    $region15: #{tpu_custom_call.1} parent=1 // pred_check_branch
      %38 = sbr.rel (0) target = $region17
    $region16: #{tpu_custom_call.1} parent=1 // pred_region
      _
    $region17: #{tpu_custom_call.1} parent=1 // pred_fallthru
      _
    // Predicated region
    $region18: #{tpu_custom_call.1} parent=1 // pred_check
      _
    $region19: #{tpu_custom_call.1} parent=1 // pred_check_branch
      %40 = sbr.rel (0) target = $region21
    $region20: #{tpu_custom_call.1} parent=1 // pred_region
      %41 = dma.done [#allocation4], 64
    $region21: #{tpu_custom_call.1} parent=1 // pred_fallthru
      _
    // Predicated region
    $region22: #{tpu_custom_call.1} parent=1 // pred_check
      _
    $region23: #{tpu_custom_call.1} parent=1 // pred_check_branch
      %43 = sbr.rel (0) target = $region25
    $region24: #{tpu_custom_call.1} parent=1 // pred_region
      %44 = dma.done [#allocation7], 1024
    $region25: #{tpu_custom_call.1} parent=1 // pred_fallthru
      _
    %v46 = vld [vmem:[#allocation3] sm:$0xf]
    %v47 = vld [vmem:[#allocation6] sm:$0xf]
    %v48 = vld [vmem:[#allocation6 + $0x4] sm:$0xf]
    %v49 = vld [vmem:[#allocation6 + $0x8] sm:$0xf]
    %v50 = vld [vmem:[#allocation6 + $0xc] sm:$0xf]
    %v51 = vld [vmem:[#allocation6 + $0x10] sm:$0xf]
    %v52 = vld [vmem:[#allocation6 + $0x14] sm:$0xf]
    %v53 = vld [vmem:[#allocation6 + $0x18] sm:$0xf]
    %v54 = vld [vmem:[#allocation6 + $0x1c] sm:$0xf]
    %v55 = vld [vmem:[#allocation6 + $0x20] sm:$0xf]
    %v56 = vld [vmem:[#allocation6 + $0x24] sm:$0xf]
    %v57 = vld [vmem:[#allocation6 + $0x28] sm:$0xf]
    %v58 = vld [vmem:[#allocation6 + $0x2c] sm:$0xf]
    %v59 = vld [vmem:[#allocation6 + $0x30] sm:$0xf]
    %v60 = vld [vmem:[#allocation6 + $0x34] sm:$0xf]
    %v61 = vld [vmem:[#allocation6 + $0x38] sm:$0xf]
    %v62 = vld [vmem:[#allocation6 + $0x3c] sm:$0xf]
    %v63 = vld [vmem:[%s2] sm:$0x1]
    %v65 = vlaneseq
    %v66 = vshrl.u32 %v65, 7
    %v67 = vsub.s32 0, %v66
    %v68 = vrot.slane %v63, %v67
    %v86 = vunpack.c.l.b16 %v47
    %v87 = vunpack.c.l.b16 %v48
    %v88 = vunpack.c.l.b16 %v49
    %v89 = vunpack.c.l.b16 %v50
    %v90 = vunpack.c.l.b16 %v51
    %v91 = vunpack.c.l.b16 %v52
    %v92 = vunpack.c.l.b16 %v53
    %v93 = vunpack.c.l.b16 %v54
    %v94 = vunpack.c.l.b16 %v55
    %v95 = vunpack.c.l.b16 %v56
    %v96 = vunpack.c.l.b16 %v57
    %v97 = vunpack.c.l.b16 %v58
    %v98 = vunpack.c.l.b16 %v59
    %v99 = vunpack.c.l.b16 %v60
    %v100 = vunpack.c.l.b16 %v61
    %v101 = vunpack.c.l.b16 %v62
    %v102 = vpack.c.b16 %v87, %v86
    %v103 = vpack.c.b16 %v89, %v88
    %v104 = vpack.c.b16 %v91, %v90
    %v105 = vpack.c.b16 %v93, %v92
    %v106 = vpack.c.b16 %v95, %v94
    %v107 = vpack.c.b16 %v97, %v96
    %v108 = vpack.c.b16 %v99, %v98
    %v109 = vpack.c.b16 %v101, %v100
    %118 = vmatprep.subr.bf16.mxu0 0
    %119 = vmatpush1.bf16.msra.mxu0 %v102
    %120 = vmatprep.subr.bf16.mxu0 0
    %121 = vmatpush1.bf16.msra.mxu0 %v103
    %122 = vmatprep.subr.bf16.mxu0 0
    %123 = vmatpush1.bf16.msra.mxu0 %v104
    %124 = vmatprep.subr.bf16.mxu0 0
    %125 = vmatpush1.bf16.msra.mxu0 %v105
    %126 = vmatprep.subr.bf16.mxu0 0
    %127 = vmatpush1.bf16.msra.mxu0 %v106
    %128 = vmatprep.subr.bf16.mxu0 0
    %129 = vmatpush1.bf16.msra.mxu0 %v107
    %130 = vmatprep.subr.bf16.mxu0 0
    %131 = vmatpush1.bf16.msra.mxu0 %v108
    %132 = vmatprep.subr.bf16.mxu0 0
    %133 = vmatpush1.bf16.msra.mxu0 %v109
    %134 = vmatprep.subr.bf16.mxu0 0
    %135 = vmatpush1.bf16.msra.mxu0 0
    %136 = vmatprep.subr.bf16.mxu0 0
    %137 = vmatpush1.bf16.msra.mxu0 0
    %138 = vmatprep.subr.bf16.mxu0 0
    %139 = vmatpush1.bf16.msra.mxu0 0
    %140 = vmatprep.subr.bf16.mxu0 0
    %141 = vmatpush1.bf16.msra.mxu0 0
    %142 = vmatprep.subr.bf16.mxu0 0
    %143 = vmatpush1.bf16.msra.mxu0 0
    %144 = vmatprep.subr.bf16.mxu0 0
    %145 = vmatpush1.bf16.msra.mxu0 0
    %146 = vmatprep.subr.bf16.mxu0 0
    %147 = vmatpush1.bf16.msra.mxu0 0
    %148 = vmatprep.subr.bf16.mxu0 0
    %149 = vmatpush1.bf16.msra.mxu0 0
    %150 = vmatprep.mubr.bf16.mxu0 0
    %151 = vmatmul.mubr.bf16.gmra.mrb[0].mxu0 %v46
    %v152 = vpop.f32.mrb[0].mxu0
    %v153 = vadd.f32 %v68, %v152
    %v154 = vpop.f32.mrb[0].mxu0
    %v155 = vpop.f32.mrb[0].mxu0
    %v156 = vpop.f32.mrb[0].mxu0
    %157 = vdwg.mxu0
    %v158 = vmul.f32 %v153, %v153
    %vm159 = vcmask 261120
    %v160 = vsel %vm159, %v158, 0.0
    %161 = vadd.xlane.f32.xlu0 %v160
    %v162 = vpop.xlane.xlu0 %161
    %164 = vrot.lane.b32.xlu0 %v158, 96
    %v165 = vpop.permute.xlu0 %164
    %v167 = vsel %vm159, %v165, 0.0
    %168 = vadd.xlane.f32.xlu0 %v167
    %v169 = vpop.xlane.xlu0 %168
    %171 = vrot.lane.b32.xlu0 %v153, 96
    %v172 = vpop.permute.xlu0 %171
    %v174 = vmul.f32 %v153, %v172
    %v175 = vsel %vm159, %v174, 0.0
    %176 = vadd.xlane.f32.xlu0 %v175
    %v177 = vpop.xlane.xlu0 %176
    %v178 = vmul.f32 %v162, %v169
    %v179 = vrsqrt.pop %v178
    %v180 = vmul.f32 %v177, %v179
    %s181 = sld [smem:[#allocation2]]
    %v182 = vstv %s181
    %v183 = vmul.f32 %v180, %v182
    %v184 = vlaneseq
    %v185 = vand.u32 %v184, 127
    %vm186 = vcmp.eq.s32.totalorder %v185, 64
    %v187 = vsel %vm186, %v183, %v153
    %188 = vst [vmem:[#allocation8] sm:$0xff] %v187
    // Predicated region
    $region26: #{tpu_custom_call.1} parent=1 // pred_check
      _
    $region27: #{tpu_custom_call.1} parent=1 // pred_check_branch
      %190 = sbr.rel (0) target = $region29
    $region28: #{tpu_custom_call.1} parent=1 // pred_region
      %s192 = ssub.s32 128, 128
      %193 = vsyncadd [#allocation5], %s192
      %s195 = sshll.u32 [#allocation8], 4
      %s196 = int_to_ptr.vmem [resolvable:$true] %s195
      %198 = dma.vmem_to_hbm [thread:$0]  %s196, 128, %s4, [#allocation5]
    $region29: #{tpu_custom_call.1} parent=1 // pred_fallthru
      _
    // Predicated region
    $region30: #{tpu_custom_call.1} parent=1 // pred_check
      _
    $region31: #{tpu_custom_call.1} parent=1 // pred_check_branch
      %200 = sbr.rel (0) target = $region33
    $region32: #{tpu_custom_call.1} parent=1 // pred_region
      %201 = dma.done [#allocation5], 128
    $region33: #{tpu_custom_call.1} parent=1 // pred_fallthru
      _
    %202 = vsyncpa [#allocation4], 1
    %203 = vsyncpa [#allocation7], 1
    %204 = vsyncpa [#allocation5], 1

</llo_original>
